<compile_context>
chip_gen: v7x
topology: tpu7x:2x2x1
jax: 0.10.0
libtpu: 0.0.40
codegen_flags: <defaults>
</compile_context>

<pallas_src>
import jax
import jax.numpy as jnp
from jax import lax
from jax.experimental import pallas as pl
from jax.experimental.pallas import tpu as pltpu


_LANE = 128


def _round_up(x, m):
    return (x + m - 1) // m * m


def _vmem_capacity_bytes():
    try:
        return int(pltpu.get_tpu_info().vmem_capacity_bytes)
    except Exception:
        return 64 << 20  # conservative fallback (v7x per-TensorCore VMEM)


def _choose_tiles(C, UV, S, in_itemsize, out_itemsize, footprint_budget):
    """Pick (TC, TS) maximizing bytes moved per grid step under the VMEM budget."""
    sub_in = max(8, 32 // in_itemsize)      # dtype-aware sublane multiple (8/16/32)
    sub_out = max(8, 32 // out_itemsize)
    uv_pad = _round_up(UV, sub_in)

    def footprint(tc, ts):
        ts_pad = _round_up(ts, _LANE)
        in_blk = tc * uv_pad * ts_pad * in_itemsize            # padded VMEM tile
        out_blk = _round_up(tc, sub_out) * ts_pad * out_itemsize
        scratch = 5 * tc * ts_pad * 4                          # f32 partial accumulators
        return 2 * in_blk + 2 * out_blk + scratch              # double-buffered in/out

    # Spatial tile: full plane if it fits, else the largest multiple of 128 dividing S.
    if footprint(1, S) <= footprint_budget:
        ts = S
    else:
        ts = None
        cand = (S // _LANE) * _LANE
        while cand >= _LANE:
            if S % cand == 0 and footprint(1, cand) <= footprint_budget:
                ts = cand
                break
            cand -= _LANE
        if ts is None:
            ts = S  # fall back to full extent; caller raises vmem_limit_bytes

    # Channel blocking only when a full plane fits in one step (small-plane case).
    # Valid TC values keep the output block legal: TC == C, TC % 8 == 0, or TC == 1.
    tc = 1
    if ts == S:
        cands = sorted({C} | {d for d in range(8, C + 1, 8) if C % d == 0} | {1},
                       reverse=True)
        for c in cands:
            if footprint(c, S) <= footprint_budget:
                tc = c
                break

    return tc, ts, footprint(tc, ts)


def lf_ang_avg_pooling(x, uv_diameter, *, out_dtype=None):
    """Pallas TPU implementation of LFAngAvgPooling.forward.

    x: [B, C, U, V, H, W] with U == V == uv_diameter.
    returns: [B, C, H, W], mean over the angular dims (dtype-preserving by default).
    """
    B, C, U, V, H, W = x.shape
    assert U == uv_diameter and V == uv_diameter, "angular dims must equal uv_diameter"
    UV, S = U * V, H * W
    out_dtype = x.dtype if out_dtype is None else jnp.dtype(out_dtype)
    inv_den = 1.0 / float(uv_diameter * uv_diameter)

    # Free row-major merges: lane-dense spatial axis even when W < 128.
    x_flat = x.reshape(B, C, UV, S)

    vmem_cap = _vmem_capacity_bytes()
    vmem_limit = int(min(vmem_cap * 7 // 8, 96 << 20))
    footprint_budget = int(min(vmem_limit * 5 // 8, 48 << 20))

    in_item = jnp.dtype(x.dtype).itemsize
    out_item = jnp.dtype(out_dtype).itemsize
    tc, ts, step_bytes = _choose_tiles(C, UV, S, in_item, out_item, footprint_budget)
    # If the degenerate fallback exceeded the nominal budget, raise the limit (capped
    # at physical VMEM) instead of failing compilation on the scoped default.
    vmem_limit = int(max(vmem_limit, min(step_bytes + (8 << 20), vmem_cap)))

    c_block = None if tc == 1 else tc       # None -> squeezed C dim
    grid = (B, C // tc, S // ts)
    n_acc = min(4, UV)

    def kernel(x_ref, o_ref):
        x_blk = x_ref[...]                  # (TC, UV, TS) or (UV, TS)
        ang_axis = x_blk.ndim - 2

        def plane(k):
            return lax.index_in_dim(x_blk, k, axis=ang_axis,
                                    keepdims=False).astype(jnp.float32)

        # <=4 f32 partial accumulators, combined at the end: short dependency
        # chains and bounded live temporaries regardless of UV (3x3 .. 9x9).
        accs = [plane(k) for k in range(n_acc)]
        for k in range(n_acc, UV):
            accs[k % n_acc] = accs[k % n_acc] + plane(k)
        total = accs[0]
        for a in accs[1:]:
            total = total + a
        o_ref[...] = (total * inv_den).astype(o_ref.dtype)

    out_flat = pl.pallas_call(
        kernel,
        out_shape=jax.ShapeDtypeStruct((B, C, S), out_dtype),
        grid_spec=pltpu.PrefetchScalarGridSpec(
            num_scalar_prefetch=0,
            grid=grid,
            in_specs=[
                pl.BlockSpec((None, c_block, UV, ts),
                             lambda b, c, s: (b, c, 0, s)),
            ],
            out_specs=pl.BlockSpec((None, c_block, ts),
                                   lambda b, c, s: (b, c, s)),
        ),
        compiler_params=pltpu.CompilerParams(
            dimension_semantics=("parallel", "parallel", "parallel"),
            vmem_limit_bytes=vmem_limit,
        ),
    )(x_flat)

    return out_flat.reshape(B, C, H, W)


def reference(x, uv_diameter):
    """Pure-JAX port of the PyTorch forward (for verification)."""
    s = jnp.sum(x.astype(jnp.float32), axis=(2, 3)) / float(uv_diameter * uv_diameter)
    return s.astype(x.dtype)


if __name__ == "__main__":
    key = jax.random.PRNGKey(0)
    B, C, uv_diameter, H, W = 2, 4, 3, 16, 16
    x = jax.random.normal(
        key, (B, C, uv_diameter, uv_diameter, H, W), dtype=jnp.float32
    )

    out = lf_ang_avg_pooling(x, uv_diameter)
    out = jax.block_until_ready(out)

    ref = reference(x, uv_diameter)
    assert out.shape == ref.shape, (out.shape, ref.shape)
    assert out.dtype == x.dtype, (out.dtype, x.dtype)
    max_err = float(jnp.max(jnp.abs(out.astype(jnp.float32) - ref.astype(jnp.float32))))
    assert max_err < 1e-5, f"max abs err = {max_err}"

    print("KERNEL_OK")
</pallas_src>

<mosaic_0001>
module attributes {stable_mosaic.version = 11 : i64} {
  func.func @kernel(%arg0: i32, %arg1: i32, %arg2: i32, %arg3: memref<1x4x9x256xf32, #tpu.memory_space<vmem>>, %arg4: memref<1x4x256xf32, #tpu.memory_space<vmem>>) attributes {dimension_semantics = [#tpu.dimension_semantics<parallel>, #tpu.dimension_semantics<parallel>, #tpu.dimension_semantics<parallel>], iteration_bounds = array<i64: 2, 1, 1>, scalar_prefetch = 0 : i64, scratch_operands = 0 : i64, tpu.core_type = #tpu.core_type<tc>, window_params = [{transform_indices = @transform_0, window_bounds = array<i64: 1, 4, 9, 256>}, {transform_indices = @transform_1, window_bounds = array<i64: 1, 4, 256>}]} {
    %c0 = arith.constant 0 : index
    %c0_0 = arith.constant 0 : index
    %c0_1 = arith.constant 0 : index
    %c0_2 = arith.constant 0 : index
    %0 = vector.load %arg3[%c0, %c0_0, %c0_1, %c0_2] : memref<1x4x9x256xf32, #tpu.memory_space<vmem>>, vector<1x4x9x256xf32>
    %1 = vector.shape_cast %0 : vector<1x4x9x256xf32> to vector<4x9x256xf32>
    %2 = vector.extract_strided_slice %1 {offsets = [0, 0, 0], sizes = [4, 1, 256], strides = [1, 1, 1]} : vector<4x9x256xf32> to vector<4x1x256xf32>
    %3 = vector.shape_cast %2 : vector<4x1x256xf32> to vector<4x256xf32>
    %4 = vector.extract_strided_slice %1 {offsets = [0, 1, 0], sizes = [4, 1, 256], strides = [1, 1, 1]} : vector<4x9x256xf32> to vector<4x1x256xf32>
    %5 = vector.shape_cast %4 : vector<4x1x256xf32> to vector<4x256xf32>
    %6 = vector.extract_strided_slice %1 {offsets = [0, 2, 0], sizes = [4, 1, 256], strides = [1, 1, 1]} : vector<4x9x256xf32> to vector<4x1x256xf32>
    %7 = vector.shape_cast %6 : vector<4x1x256xf32> to vector<4x256xf32>
    %8 = vector.extract_strided_slice %1 {offsets = [0, 3, 0], sizes = [4, 1, 256], strides = [1, 1, 1]} : vector<4x9x256xf32> to vector<4x1x256xf32>
    %9 = vector.shape_cast %8 : vector<4x1x256xf32> to vector<4x256xf32>
    %10 = vector.extract_strided_slice %1 {offsets = [0, 4, 0], sizes = [4, 1, 256], strides = [1, 1, 1]} : vector<4x9x256xf32> to vector<4x1x256xf32>
    %11 = vector.shape_cast %10 : vector<4x1x256xf32> to vector<4x256xf32>
    %12 = arith.addf %3, %11 : vector<4x256xf32>
    %13 = vector.extract_strided_slice %1 {offsets = [0, 5, 0], sizes = [4, 1, 256], strides = [1, 1, 1]} : vector<4x9x256xf32> to vector<4x1x256xf32>
    %14 = vector.shape_cast %13 : vector<4x1x256xf32> to vector<4x256xf32>
    %15 = arith.addf %5, %14 : vector<4x256xf32>
    %16 = vector.extract_strided_slice %1 {offsets = [0, 6, 0], sizes = [4, 1, 256], strides = [1, 1, 1]} : vector<4x9x256xf32> to vector<4x1x256xf32>
    %17 = vector.shape_cast %16 : vector<4x1x256xf32> to vector<4x256xf32>
    %18 = arith.addf %7, %17 : vector<4x256xf32>
    %19 = vector.extract_strided_slice %1 {offsets = [0, 7, 0], sizes = [4, 1, 256], strides = [1, 1, 1]} : vector<4x9x256xf32> to vector<4x1x256xf32>
    %20 = vector.shape_cast %19 : vector<4x1x256xf32> to vector<4x256xf32>
    %21 = arith.addf %9, %20 : vector<4x256xf32>
    %22 = vector.extract_strided_slice %1 {offsets = [0, 8, 0], sizes = [4, 1, 256], strides = [1, 1, 1]} : vector<4x9x256xf32> to vector<4x1x256xf32>
    %23 = vector.shape_cast %22 : vector<4x1x256xf32> to vector<4x256xf32>
    %24 = arith.addf %12, %23 : vector<4x256xf32>
    %25 = arith.addf %24, %15 : vector<4x256xf32>
    %26 = arith.addf %25, %18 : vector<4x256xf32>
    %27 = arith.addf %26, %21 : vector<4x256xf32>
    %cst = arith.constant 0.111111112 : f32
    %28 = vector.broadcast %cst : f32 to vector<4x256xf32>
    %29 = arith.mulf %27, %28 : vector<4x256xf32>
    %c0_3 = arith.constant 0 : index
    %c0_4 = arith.constant 0 : index
    %c0_5 = arith.constant 0 : index
    %30 = vector.load %arg4[%c0_3, %c0_4, %c0_5] : memref<1x4x256xf32, #tpu.memory_space<vmem>>, vector<1x4x256xf32>
    %31 = vector.shape_cast %30 : vector<1x4x256xf32> to vector<4x256xf32>
    %32 = vector.shape_cast %29 : vector<4x256xf32> to vector<1x4x256xf32>
    tpu.vector_store %arg4[%c0_3, %c0_4, %c0_5], %32 {strides = array<i32>} : memref<1x4x256xf32, #tpu.memory_space<vmem>>, vector<1x4x256xf32>,
    return
  }
  func.func @transform_0(%arg0: i32, %arg1: i32, %arg2: i32) -> (i32, i32, i32, i32) {
    %c0_i32 = arith.constant 0 : i32
    %c0_i32_0 = arith.constant 0 : i32
    return %arg0, %arg1, %c0_i32, %arg2 : i32, i32, i32, i32
  }
  func.func @transform_1(%arg0: i32, %arg1: i32, %arg2: i32) -> (i32, i32, i32) {
    %c0_i32 = arith.constant 0 : i32
    return %arg0, %arg1, %arg2 : i32, i32, i32
  }
}

</mosaic_0001>

<llo_original>
// kernel: tpu_custom_call.1
$region0: #{tpu_custom_call.1}
  #allocation0 [shape = 'u32[]', space=smem, size = 0x4, offset = 0x4, fixed_abs, tag = 'smem constant byte address 0x4 - core index']
  #allocation1 [shape = 'u32[144,128]{1,0:T(1,128)}', space=vmem, size = 0x12000, scoped, tag = 'internal scratch']
  %s0 = inlined_call_operand.vmem [shape: f32[2,4,9,256], index: 0, kind: input, shape index: {}]
  %s1 = inlined_call_operand.hbm [shape: f32[2,4,256], index: 1, kind: output, shape index: {}]
  %s2 = sld [smem:[#allocation0]]
  $region37: #{tpu_custom_call.1} parent=0
    _
  %s4 = ssub.s32 1, %s2
  %s5 = scalar_select 0, %s4, %s2
  $region1: #{tpu_custom_call.1} parent=0
    #allocation2 [shape = 'u8[8192]{0}', space=vmem, size = 0x2000, scoped, tag = 'output window, operand 0']
    #allocation3 [shape = 's32[2]{0}', space=sflag, size = 0x8, scoped, tag = 'scoped memory for tpu_custom_call.1']
    %6 = vsyncpa [#allocation3], 0
    %s7 = scalar_lea.sflag [#allocation3], 1
    %8 = vsyncpa %s7, 0
    loop: start=0, step=1, limit=4
    $region2: #{tpu_custom_call.1} parent=1 // loop_pre_header
      _
    $region3: #{tpu_custom_call.1} parent=1 // loop_header
      %s10 = sphi 0, %s14
      %p11 = scmp.ge.s32.totalorder %s10, 4
      %s17 = sphi 0, %s36
      %s18 = sphi 0, %s32
      %s19 = sphi 0, %s28
      %s20 = sphi 0, %s17
      %s21 = sphi 0, %s18
      %s22 = sphi 0, %s19
      %s23 = sphi 0, %s20
      %s24 = sphi 0, %s21
      %s25 = sphi 0, %s22
      %s43 = sphi 0, %s45
      %s46 = sphi 0, %s43
      %s47 = sphi 0, %s46
      %s63 = sphi 0, %s47
      %s73 = sphi 0, %s75
      %s76 = sphi 0, %s73
      %s77 = sphi 0, %s76
      %s93 = sphi 0, %s77
    $region4: #{tpu_custom_call.1} parent=1 // loop_header_branch
      %13 = sbr.rel (%p11) target = $region8
    $region5: #{tpu_custom_call.1} parent=1 // loop_body
      %s15 = ssub.s32 %s10, 1
      %s16 = ssub.s32 %s10, 2
      %s26 = sadd.s32 1, %s19
      %p27 = scmp.ge.s32.totalorder %s26, 1
      %s28 = scalar_select %p27, 0, %s26
      %s29 = sadd.s32 1, %s18
      %s30 = scalar_select %p27, %s29, %s18
      %p31 = scmp.ge.s32.totalorder %s30, 1
      %s32 = scalar_select %p31, 0, %s30
      %s33 = sadd.s32 1, %s17
      %s34 = scalar_select %p31, %s33, %s17
      %p35 = scmp.ge.s32.totalorder %s34, 2
      %s36 = scalar_select %p35, 0, %s34
      %s37 = ssub.s32 %s17, %s36
      %s38 = ssub.s32 %s18, %s32
      %s39 = sor.u32 %s37, %s38
      %s40 = ssub.s32 %s19, %s28
      %s41 = sor.u32 %s39, %s40
      %p42 = scmp.eq.s32.totalorder %s41, 0
      %s44 = sadd.s32 %s43, 1
      %s45 = scalar_select %p42, %s43, %s44
      %p48 = pneg %p42
      %p49 = scmp.eq.s32.totalorder %s10, 1
      %p50 = por %p48, %p49
      %p51 = scmp.ne.s32.totalorder %s43, %s46
      %p52 = scmp.eq.s32.totalorder %s10, 0
      %p53 = por %p51, %p52
      %p54 = scmp.ne.s32.totalorder %s43, %s46
      %p55 = scmp.eq.s32.totalorder %s15, 1
      %p56 = por %p54, %p55
      %p57 = scmp.ne.s32.totalorder %s46, %s47
      %p58 = scmp.eq.s32.totalorder %s15, 0
      %p59 = por %p57, %p58
      %p60 = scmp.ne.s32.totalorder %s46, %s47
      %p61 = scmp.eq.s32.totalorder %s16, 1
      %p62 = por %p60, %p61
      %p64 = scmp.ne.s32.totalorder %s47, %s63
      %p65 = scmp.eq.s32.totalorder %s16, 0
      %p66 = por %p64, %p65
      %s67 = ssub.s32 %s17, %s36
      %s68 = ssub.s32 %s18, %s32
      %s69 = sor.u32 %s67, %s68
      %s70 = ssub.s32 %s19, %s28
      %s71 = sor.u32 %s69, %s70
      %p72 = scmp.eq.s32.totalorder %s71, 0
      %s74 = sadd.s32 %s73, 1
      %s75 = scalar_select %p72, %s73, %s74
      %p78 = pneg %p72
      %p79 = scmp.eq.s32.totalorder %s10, 1
      %p80 = por %p78, %p79
      %p81 = scmp.ne.s32.totalorder %s73, %s76
      %p82 = scmp.eq.s32.totalorder %s10, 0
      %p83 = por %p81, %p82
      %p84 = scmp.ne.s32.totalorder %s73, %s76
      %p85 = scmp.eq.s32.totalorder %s15, 1
      %p86 = por %p84, %p85
      %p87 = scmp.ne.s32.totalorder %s76, %s77
      %p88 = scmp.eq.s32.totalorder %s15, 0
      %p89 = por %p87, %p88
      %p90 = scmp.ne.s32.totalorder %s76, %s77
      %p91 = scmp.eq.s32.totalorder %s16, 1
      %p92 = por %p90, %p91
      %p94 = scmp.ne.s32.totalorder %s77, %s93
      %p95 = scmp.eq.s32.totalorder %s16, 0
      %p96 = por %p94, %p95
      %p97 = scmp.le.s32.totalorder 1, %s10
      %p98 = scmp.lt.s32.totalorder %s10, 3
      %p99 = pnand %p97, %p98
      %p100 = pneg %p99
      // Predicated region
      $region9: #{tpu_custom_call.1} parent=5 // pred_check
        _
      $region10: #{tpu_custom_call.1} parent=5 // pred_check_branch
        %102 = sbr.rel (%p99) target = $region12
      $region11: #{tpu_custom_call.1} parent=5 // pred_region
        %s103 = ssub.s32 %s10, 1
      $region12: #{tpu_custom_call.1} parent=5 // pred_fallthru
        _
      %p104 = scmp.lt.s32.totalorder %s10, 2
      // Predicated region
      $region13: #{tpu_custom_call.1} parent=5 // pred_check
        %p105 = pneg %p104
      $region14: #{tpu_custom_call.1} parent=5 // pred_check_branch
        %107 = sbr.rel (%p105) target = $region16
      $region15: #{tpu_custom_call.1} parent=5 // pred_region
        // Predicated region
        $region17: #{tpu_custom_call.1} parent=15 // pred_check
          %p108 = pneg %p53
        $region18: #{tpu_custom_call.1} parent=15 // pred_check_branch
          %110 = sbr.rel (%p108) target = $region20
        $region19: #{tpu_custom_call.1} parent=15 // pred_region
          %s111 = smul.u32 4, %s18
          %s112 = smul.u32 2, %s19
          %p113 = scmp.lt.s32.totalorder %s17, 1
          %s114 = scalar_select %p113, %s17, 1
          %p115 = scmp.lt.s32.totalorder %s111, 3
          %s116 = scalar_select %p115, %s111, 3
          %p117 = scmp.lt.s32.totalorder %s112, 1
          %s118 = scalar_select %p117, %s112, 1
          %s119 = smul.addr %s116, 4
          %s120 = sadd.s32 %s118, %s119
          %s121 = smul.addr %s114, 16
          %s122 = sadd.s32 %s120, %s121
          %s123 = smul.addr %s122, 8
          %s124 = scalar_lea.vmem %s0, %s123
          %s125 = smul.u32 4, %s18
          %s126 = smul.u32 2, %s19
        $region20: #{tpu_custom_call.1} parent=15 // pred_fallthru
          _
      $region16: #{tpu_custom_call.1} parent=5 // pred_fallthru
        _
      %p127 = scmp.le.s32.totalorder 1, %s10
      %p128 = scmp.lt.s32.totalorder %s10, 3
      %p129 = pnand %p127, %p128
      %p130 = pneg %p129
      // Predicated region
      $region21: #{tpu_custom_call.1} parent=5 // pred_check
        _
      $region22: #{tpu_custom_call.1} parent=5 // pred_check_branch
        %132 = sbr.rel (%p129) target = $region24
      $region23: #{tpu_custom_call.1} parent=5 // pred_region
        %s133 = ssub.s32 %s10, 1
        %s134 = smul.u32 4, %s21
        %s135 = smul.u32 2, %s22
        %p136 = scmp.lt.s32.totalorder %s20, 1
        %s137 = scalar_select %p136, %s20, 1
        %p138 = scmp.lt.s32.totalorder %s134, 3
        %s139 = scalar_select %p138, %s134, 3
        %p140 = scmp.lt.s32.totalorder %s135, 1
        %s141 = scalar_select %p140, %s135, 1
        %s142 = smul.addr %s139, 4
        %s143 = sadd.s32 %s141, %s142
        %s144 = smul.addr %s137, 16
        %s145 = sadd.s32 %s143, %s144
        %s146 = smul.addr %s145, 8
        %s147 = scalar_lea.vmem %s0, %s146
        %p148 = pneg %p59
        %p149 = pneg %p56
        %p150 = pneg %p89
        %p151 = pneg %p86
        %s152 = sand.u32 %s76, 1
        %s153 = scalar_lea.sflag [#allocation3], %s152
        %s154 = sand.u32 %s76, 1
        %s155 = smul.addr %s154, 8
        %s156 = scalar_lea.vmem [#allocation2], %s155
        %s157 = smul.u32 4, %s21
        %s158 = smul.u32 2, %s22
        %p159 = scmp.lt.s32.totalorder %s20, 1
        %s160 = scalar_select %p159, %s20, 1
        %p161 = scmp.lt.s32.totalorder %s157, 3
        %s162 = scalar_select %p161, %s157, 3
        %p163 = scmp.lt.s32.totalorder %s158, 1
        %s164 = scalar_select %p163, %s158, 1
        %s165 = smul.addr %s162, 4
        %s166 = sadd.s32 %s164, %s165
        %s167 = smul.addr %s160, 16
        %s168 = sadd.s32 %s166, %s167
        %s169 = smul.addr %s168, 8
        %s170 = scalar_lea.vmem %s0, %s169
        %s171 = smul.u32 4, %s21
        %s172 = smul.u32 2, %s22
        %s173 = smul.u32 2, %s22
        %v174 = vld [vmem:[%s170] sm:$0xff]
        %v175 = vld [vmem:[%s170 + $0x8] sm:$0xff]
        %v176 = vld [vmem:[%s170 + $0x10] sm:$0x1]
        %v177 = vld [vmem:[%s170 + $0x18] sm:$0x1]
        %v178 = vld [vmem:[%s170 + $0x20] sm:$0xff]
        %v179 = vld [vmem:[%s170 + $0x28] sm:$0xff]
        %v180 = vld [vmem:[%s170 + $0x30] sm:$0x1]
        %v181 = vld [vmem:[%s170 + $0x38] sm:$0x1]
        %v182 = vld [vmem:[%s170 + $0x40] sm:$0xff]
        %v183 = vld [vmem:[%s170 + $0x48] sm:$0xff]
        %v184 = vld [vmem:[%s170 + $0x50] sm:$0x1]
        %v185 = vld [vmem:[%s170 + $0x58] sm:$0x1]
        %v186 = vld [vmem:[%s170 + $0x60] sm:$0xff]
        %v187 = vld [vmem:[%s170 + $0x68] sm:$0xff]
        %v188 = vld [vmem:[%s170 + $0x70] sm:$0x1]
        %v189 = vld [vmem:[%s170 + $0x78] sm:$0x1]
        %v198 = vrot.slane %v174, 4
        %v199 = vrot.slane %v175, 4
        %v200 = vrot.slane %v178, 4
        %v201 = vrot.slane %v179, 4
        %v202 = vrot.slane %v182, 4
        %v203 = vrot.slane %v183, 4
        %v204 = vrot.slane %v186, 4
        %v205 = vrot.slane %v187, 4
        %v214 = vadd.f32 %v174, %v198
        %v215 = vadd.f32 %v175, %v199
        %v216 = vadd.f32 %v178, %v200
        %v217 = vadd.f32 %v179, %v201
        %v218 = vadd.f32 %v182, %v202
        %v219 = vadd.f32 %v183, %v203
        %v220 = vadd.f32 %v186, %v204
        %v221 = vadd.f32 %v187, %v205
        %v222 = vadd.f32 %v214, %v176
        %v223 = vadd.f32 %v215, %v177
        %v224 = vadd.f32 %v216, %v180
        %v225 = vadd.f32 %v217, %v181
        %v226 = vadd.f32 %v218, %v184
        %v227 = vadd.f32 %v219, %v185
        %v228 = vadd.f32 %v220, %v188
        %v229 = vadd.f32 %v221, %v189
        %v238 = vrot.slane %v214, 1
        %v239 = vrot.slane %v215, 1
        %v240 = vrot.slane %v216, 1
        %v241 = vrot.slane %v217, 1
        %v242 = vrot.slane %v218, 1
        %v243 = vrot.slane %v219, 1
        %v244 = vrot.slane %v220, 1
        %v245 = vrot.slane %v221, 1
        %v254 = vadd.f32 %v222, %v238
        %v255 = vadd.f32 %v223, %v239
        %v256 = vadd.f32 %v224, %v240
        %v257 = vadd.f32 %v225, %v241
        %v258 = vadd.f32 %v226, %v242
        %v259 = vadd.f32 %v227, %v243
        %v260 = vadd.f32 %v228, %v244
        %v261 = vadd.f32 %v229, %v245
        %v262 = vrot.slane %v214, 2
        %v263 = vrot.slane %v215, 2
        %v264 = vrot.slane %v216, 2
        %v265 = vrot.slane %v217, 2
        %v266 = vrot.slane %v218, 2
        %v267 = vrot.slane %v219, 2
        %v268 = vrot.slane %v220, 2
        %v269 = vrot.slane %v221, 2
        %v278 = vadd.f32 %v254, %v262
        %v279 = vadd.f32 %v255, %v263
        %v280 = vadd.f32 %v256, %v264
        %v281 = vadd.f32 %v257, %v265
        %v282 = vadd.f32 %v258, %v266
        %v283 = vadd.f32 %v259, %v267
        %v284 = vadd.f32 %v260, %v268
        %v285 = vadd.f32 %v261, %v269
        %v286 = vrot.slane %v214, 3
        %v287 = vrot.slane %v215, 3
        %v288 = vrot.slane %v216, 3
        %v289 = vrot.slane %v217, 3
        %v290 = vrot.slane %v218, 3
        %v291 = vrot.slane %v219, 3
        %v292 = vrot.slane %v220, 3
        %v293 = vrot.slane %v221, 3
        %v302 = vadd.f32 %v278, %v286
        %v303 = vadd.f32 %v279, %v287
        %v304 = vadd.f32 %v280, %v288
        %v305 = vadd.f32 %v281, %v289
        %v306 = vadd.f32 %v282, %v290
        %v307 = vadd.f32 %v283, %v291
        %v308 = vadd.f32 %v284, %v292
        %v309 = vadd.f32 %v285, %v293
        %v310 = vmul.f32 %v302, 0.11111111
        %v311 = vmul.f32 %v303, 0.11111111
        %v312 = vmul.f32 %v304, 0.11111111
        %v313 = vmul.f32 %v305, 0.11111111
        %v314 = vmul.f32 %v306, 0.11111111
        %v315 = vmul.f32 %v307, 0.11111111
        %v316 = vmul.f32 %v308, 0.11111111
        %v317 = vmul.f32 %v309, 0.11111111
        %v326 = vcombine.low %v310, %v311
        %v327 = vcombine.low %v312, %v313
        %v328 = vcombine.low %v314, %v315
        %v329 = vcombine.low %v316, %v317
        %v330 = vrot.slane %v327, 7
        %vm331 = vcmask 1041409
        %v332 = vsel %vm331, %v330, %v326
        %vm333 = vcmask 1045509
        %v334 = vsel %vm333, %v330, %v332
        %v335 = vrot.slane %v328, 6
        %vm336 = vcmask 1042434
        %v337 = vsel %vm336, %v335, %v334
        %vm338 = vcmask 1046534
        %v339 = vsel %vm338, %v335, %v337
        %v340 = vrot.slane %v329, 5
        %vm341 = vcmask 1043459
        %v342 = vsel %vm341, %v340, %v339
        %vm343 = vcmask 1047559
        %v344 = vsel %vm343, %v340, %v342
        %346 = vst [vmem:[%s156] sm:$0xff] %v344
        %s347 = sand.u32 %s76, 1
        %s348 = scalar_lea.sflag [#allocation3], %s347
        %s349 = sand.u32 %s76, 1
        %s350 = smul.addr %s349, 8
        %s351 = scalar_lea.vmem [#allocation2], %s350
        // Predicated region
        $region25: #{tpu_custom_call.1} parent=23 // pred_check
          %p352 = pneg %p86
        $region26: #{tpu_custom_call.1} parent=23 // pred_check_branch
          %354 = sbr.rel (%p352) target = $region28
        $region27: #{tpu_custom_call.1} parent=23 // pred_region
          %s355 = smul.u32 2, %s22
          %s357 = ssub.s32 128, 128
          %358 = vsyncadd %s348, %s357
          %s359 = smul.addr %s21, 2
          %s360 = sadd.s32 %s355, %s359
          %s361 = smul.addr %s20, 2
          %s362 = sadd.s32 %s360, %s361
          %s363 = smul.addr %s362, 64
          %s364 = scalar_lea.hbm %s1, %s363
          %s366 = sshll.u32 %s351, 4
          %s367 = int_to_ptr.vmem [resolvable:$true] %s366
          %369 = dma.vmem_to_hbm [thread:$0]  %s367, 128, %s364, %s348
        $region28: #{tpu_custom_call.1} parent=23 // pred_fallthru
          _
      $region24: #{tpu_custom_call.1} parent=5 // pred_fallthru
        _
      %p370 = scmp.le.s32.totalorder 2, %s10
      // Predicated region
      $region29: #{tpu_custom_call.1} parent=5 // pred_check
        %p371 = pneg %p370
      $region30: #{tpu_custom_call.1} parent=5 // pred_check_branch
        %373 = sbr.rel (%p371) target = $region32
      $region31: #{tpu_custom_call.1} parent=5 // pred_region
        %s374 = ssub.s32 %s10, 2
        // Predicated region
        $region33: #{tpu_custom_call.1} parent=31 // pred_check
          %p375 = pneg %p92
        $region34: #{tpu_custom_call.1} parent=31 // pred_check_branch
          %377 = sbr.rel (%p375) target = $region36
        $region35: #{tpu_custom_call.1} parent=31 // pred_region
          %s378 = sand.u32 %s77, 1
          %s379 = scalar_lea.sflag [#allocation3], %s378
          %s380 = sand.u32 %s77, 1
          %s381 = smul.addr %s380, 8
          %s382 = scalar_lea.vmem [#allocation2], %s381
          %383 = dma.done %s379, 128
        $region36: #{tpu_custom_call.1} parent=31 // pred_fallthru
          _
      $region32: #{tpu_custom_call.1} parent=5 // pred_fallthru
        _
    $region6: #{tpu_custom_call.1} parent=1 // loop_footer
      %s14 = sadd.s32 1, %s10
    $region7: #{tpu_custom_call.1} parent=1 // loop_footer_branch
      %9 = sbr.rel target = $region3
    $region8: #{tpu_custom_call.1} parent=1 // loop_exit
      _
    %384 = vsyncpa [#allocation3], 1
    %s385 = scalar_lea.sflag [#allocation3], 1
    %386 = vsyncpa %s385, 1

</llo_original>
